<compile_context>
chip_gen: v6e
topology: v6e:2x2x1
jax: 0.10.0
libtpu: 0.0.40
codegen_flags: <defaults>
</compile_context>

<pallas_src>
import functools
import math

import jax
import jax.numpy as jnp
from jax import lax
from jax.experimental import pallas as pl
from jax.experimental.pallas import tpu as pltpu


def _round_up(n: int, m: int) -> int:
    return -(-n // m) * m


def _mlp_kernel(x_ref, wh_ref, bh_ref, w5_ref, b5_ref, o_ref, *,
                feat: int, num_hidden: int, compute_dtype, x_transposed: bool,
                lane_chunk: int):
    """Fused 5-layer MLP on one batch tile.

    x_ref : (F, tile_b) if x_transposed else (tile_b, F)
    wh_ref: (num_hidden*F, F)  packed hidden weights, PyTorch (out, in) layout per layer
    bh_ref: (num_hidden*F, 1)  packed hidden biases (f32)
    w5_ref: (F, 1)             final layer weight as a column
    b5_ref: (1, 1)             final layer bias (f32)
    o_ref : (1, tile_b)        lane-dense output block
    """
    tile_b = o_ref.shape[1]
    num_chunks = tile_b // lane_chunk

    # Hoist all weight/bias reads out of the lane-chunk loop: for small F these are a
    # handful of vregs and stay resident across every chunk.
    w_layers = [wh_ref[l * feat:(l + 1) * feat, :].astype(compute_dtype)
                for l in range(num_hidden)]
    b_layers = [bh_ref[l * feat:(l + 1) * feat, :] for l in range(num_hidden)]
    w5 = w5_ref[...].astype(jnp.float32)                      # (F, 1)
    b5 = b5_ref[...]                                          # (1, 1)

    for c in range(num_chunks):                               # static unroll
        lo = c * lane_chunk
        hi = lo + lane_chunk

        if x_transposed:
            # x already (F, tile_b): lane-dense chunk, plain MXU matmul.
            xc = x_ref[:, lo:hi].astype(compute_dtype)         # (F, chunk)
            h = jnp.dot(w_layers[0], xc,
                        preferred_element_type=jnp.float32)    # (F, chunk)
        else:
            # x is (tile_b, F): fold the transpose into the first dot_general.
            xc = x_ref[lo:hi, :].astype(compute_dtype)         # (chunk, F)
            h = lax.dot_general(
                w_layers[0], xc,
                dimension_numbers=(((1,), (1,)), ((), ())),
                preferred_element_type=jnp.float32)            # (F, chunk)
        h = jnp.maximum(h + b_layers[0], 0.0)

        # Hidden layers 2..num_hidden: canonical W @ h (M=F, K=F, N=chunk).
        for l in range(1, num_hidden):
            h = jnp.dot(w_layers[l], h.astype(compute_dtype),
                        preferred_element_type=jnp.float32)    # (F, chunk)
            h = jnp.maximum(h + b_layers[l], 0.0)

        # Final Linear(F, 1): VPU multiply + XLU sublane reduce (no 1-wide MXU pass);
        # result is already lane-dense (1, chunk).
        out = jnp.sum(h * w5, axis=0, keepdims=True) + b5
        o_ref[:, lo:hi] = out.astype(o_ref.dtype)


def mlp_forward(x, params, *, tile_b=None, compute_dtype=None):
    """x: (B, F). params: list of (W, b) in PyTorch nn.Linear layout: W (out, in), b (out,)."""
    B, F = x.shape
    num_layers = len(params)
    num_hidden = num_layers - 1

    ws = [w for (w, _) in params]
    bs = [b for (_, b) in params]
    for w in ws[:num_hidden]:
        assert w.shape == (F, F), w.shape
    assert ws[-1].shape == (1, F), ws[-1].shape

    # bf16 MXU inputs once the matmuls are big enough to matter (v6e/v7x peak is bf16;
    # also halves the weight-slab DMA/VMEM).  Bias/ReLU/accumulation stay f32.
    if compute_dtype is None:
        compute_dtype = jnp.bfloat16 if F >= 512 else jnp.float32
    sub_align = 16 if compute_dtype == jnp.bfloat16 else 8
    F_pad = _round_up(F, sub_align)          # keeps every slab slice tile-aligned

    # ---- pack weights / biases into aligned slabs (one DMA each) ----
    def pad2(a, rows, cols):
        return jnp.pad(a, ((0, rows - a.shape[0]), (0, cols - a.shape[1])))

    w_hidden = jnp.concatenate(
        [pad2(w, F_pad, F_pad) for w in ws[:num_hidden]], axis=0).astype(compute_dtype)
    b_hidden = jnp.concatenate(
        [jnp.pad(b, (0, F_pad - F)) for b in bs[:num_hidden]]
    ).reshape(-1, 1).astype(jnp.float32)
    w_out = pad2(ws[-1].reshape(F, 1), F_pad, 1).astype(compute_dtype)
    b_out = bs[-1].reshape(1, 1).astype(jnp.float32)

    x_itemsize = jnp.dtype(x.dtype).itemsize
    w_itemsize = jnp.dtype(compute_dtype).itemsize

    # ---- per-generation VMEM budget (v7x 64 MiB vs v5e/v6e 128 MiB physical) ----
    try:
        phys_vmem = getattr(pltpu.get_tpu_info(), "vmem_capacity_bytes", None)
    except Exception:
        phys_vmem = None
    if phys_vmem is None:
        vmem_budget = 64 * 1024 * 1024       # safe on every generation
    else:
        vmem_budget = min(int(phys_vmem * 3 // 4), 100 * 1024 * 1024)

    def vmem_usage(tb, lane_chunk):
        x_tile = 2 * tb * F_pad * x_itemsize                       # double-buffered x stream
        w_slab = num_hidden * F_pad * F_pad * w_itemsize           # single-buffered slab
        b_slab = (num_hidden * F_pad + F_pad + 1) * 4
        out_tile = 2 * tb * x_itemsize
        live = 3 * F_pad * max(lane_chunk, 128) * 4                # live activations
        return x_tile + w_slab + b_slab + out_tile + live

    # ---- batch-tile heuristic ----
    if tile_b is None:
        if B < 256:
            # Small batch: single 128-lane-aligned tile (or whole 8-aligned batch).
            tile_b = _round_up(B, 128) if B >= 128 else _round_up(max(B, 1), 8)
        else:
            # >= 2 grid steps so v7x's second TensorCore gets work; ~2K rows/step with
            # minimal zero padding for larger batches.
            num_steps = max(2, pl.cdiv(B, 2048))
            tile_b = _round_up(pl.cdiv(B, num_steps), 128)
    else:
        tile_b = _round_up(tile_b, 8)

    def pick_lane_chunk(tb):
        # For lane-sparse F (< 128) keep activations in vregs by chunking the lane
        # (batch) dimension; the chunk always divides tile_b and is >= 128 when possible.
        return math.gcd(tb, 512) if F_pad < 128 else tb

    lane_chunk = pick_lane_chunk(tile_b)
    while tile_b > 128 and vmem_usage(tile_b, lane_chunk) > vmem_budget:
        tile_b = _round_up(tile_b // 2, 128)
        lane_chunk = pick_lane_chunk(tile_b)

    B_pad = _round_up(B, tile_b)
    num_tiles = B_pad // tile_b

    x_p = x
    if B_pad != B or F_pad != F:
        x_p = jnp.pad(x, ((0, B_pad - B), (0, F_pad - F)))

    # For small F, present x to the kernel as (F, B): lane-dense tiles, no in-kernel
    # transpose before the MXU.
    x_transposed = F_pad < 128
    x_in = x_p.T if x_transposed else x_p

    kernel = functools.partial(
        _mlp_kernel, feat=F_pad, num_hidden=num_hidden,
        compute_dtype=compute_dtype, x_transposed=x_transposed,
        lane_chunk=lane_chunk)

    def _call(single_buffer_weights: bool):
        const_kw = {"pipeline_mode": pl.Buffered(1)} if single_buffer_weights else {}

        def const_spec(shape):
            # Grid-invariant block: constant index_map (+ single buffer when supported).
            return pl.BlockSpec(shape, lambda i: (0, 0), **const_kw)

        if x_transposed:
            x_block = pl.BlockSpec((F_pad, tile_b), lambda i: (0, i))
        else:
            x_block = pl.BlockSpec((tile_b, F_pad), lambda i: (i, 0))

        return pl.pallas_call(
            kernel,
            out_shape=jax.ShapeDtypeStruct((1, B_pad), x.dtype),
            grid_spec=pltpu.PrefetchScalarGridSpec(
                num_scalar_prefetch=0,
                grid=(num_tiles,),
                in_specs=[
                    x_block,                          # batch tile of x
                    const_spec(w_hidden.shape),       # (4*F_pad, F_pad) weight slab
                    const_spec(b_hidden.shape),       # (4*F_pad, 1) bias slab
                    const_spec(w_out.shape),          # (F_pad, 1)
                    const_spec(b_out.shape),          # (1, 1)
                ],
                out_specs=pl.BlockSpec((1, tile_b), lambda i: (0, i)),  # lane-dense out
            ),
            compiler_params=pltpu.CompilerParams(
                dimension_semantics=("parallel",),
                vmem_limit_bytes=int(vmem_budget)),
        )(x_in, w_hidden, b_hidden, w_out, b_out)

    try:
        out = _call(True)
    except Exception:
        # Fallback if pipeline_mode=pl.Buffered(1) is rejected for top-level
        # pallas_call BlockSpecs in this jax version.
        out = _call(False)

    return out[0, :B].reshape(B, 1)


def init_params(key, in_features, num_layers=5):
    """Deterministic init mimicking nn.Linear's U(-1/sqrt(fan_in), 1/sqrt(fan_in)).

    Weights are in PyTorch layout: W (out_features, in_features), b (out_features,).
    """
    params = []
    for i in range(num_layers):
        out_features = in_features if i < num_layers - 1 else 1
        key, kw, kb = jax.random.split(key, 3)
        bound = 1.0 / (in_features ** 0.5)
        w = jax.random.uniform(kw, (out_features, in_features), jnp.float32,
                               minval=-bound, maxval=bound)
        b = jax.random.uniform(kb, (out_features,), jnp.float32,
                               minval=-bound, maxval=bound)
        params.append((w, b))
    return params


def mlp_reference(x, params):
    h = x
    for i, (w, b) in enumerate(params):
        h = h @ w.T + b
        if i < len(params) - 1:
            h = jnp.maximum(h, 0.0)
    return h


if __name__ == "__main__":
    key = jax.random.PRNGKey(0)
    in_features = 32
    batch = 16

    key, kx = jax.random.split(key)
    x = jax.random.normal(kx, (batch, in_features), jnp.float32)
    params = init_params(key, in_features, num_layers=5)

    out = mlp_forward(x, params)
    out = jax.block_until_ready(out)

    ref = mlp_reference(x, params)
    assert out.shape == (batch, 1), out.shape
    err = float(jnp.max(jnp.abs(out - ref)))
    assert jnp.allclose(out, ref, atol=1e-4, rtol=1e-4), f"mismatch vs reference, max abs err={err}"

    print("KERNEL_OK")
</pallas_src>

<mosaic_0001>
module attributes {stable_mosaic.version = 11 : i64} {
  func.func @_mlp_kernel(%arg0: i32, %arg1: memref<32x16xf32, #tpu.memory_space<vmem>>, %arg2: memref<128x32xf32, #tpu.memory_space<vmem>>, %arg3: memref<128x1xf32, #tpu.memory_space<vmem>>, %arg4: memref<32x1xf32, #tpu.memory_space<vmem>>, %arg5: memref<1x1xf32, #tpu.memory_space<vmem>>, %arg6: memref<1x16xf32, #tpu.memory_space<vmem>>) attributes {dimension_semantics = [#tpu.dimension_semantics<parallel>], iteration_bounds = array<i64: 1>, scalar_prefetch = 0 : i64, scratch_operands = 0 : i64, tpu.core_type = #tpu.core_type<tc>, window_params = [{transform_indices = @transform_0, window_bounds = array<i64: 32, 16>}, {pipeline_mode = #tpu.pipeline_mode<synchronous>, transform_indices = @transform_1, window_bounds = array<i64: 128, 32>}, {pipeline_mode = #tpu.pipeline_mode<synchronous>, transform_indices = @transform_2, window_bounds = array<i64: 128, 1>}, {pipeline_mode = #tpu.pipeline_mode<synchronous>, transform_indices = @transform_3, window_bounds = array<i64: 32, 1>}, {pipeline_mode = #tpu.pipeline_mode<synchronous>, transform_indices = @transform_4, window_bounds = array<i64: 1, 1>}, {transform_indices = @transform_5, window_bounds = array<i64: 1, 16>}]} {
    %c0 = arith.constant 0 : index
    %c0_0 = arith.constant 0 : index
    %0 = vector.load %arg2[%c0, %c0_0] : memref<128x32xf32, #tpu.memory_space<vmem>>, vector<32x32xf32>
    %c32 = arith.constant 32 : index
    %c0_1 = arith.constant 0 : index
    %1 = vector.load %arg2[%c32, %c0_1] : memref<128x32xf32, #tpu.memory_space<vmem>>, vector<32x32xf32>
    %c64 = arith.constant 64 : index
    %c0_2 = arith.constant 0 : index
    %2 = vector.load %arg2[%c64, %c0_2] : memref<128x32xf32, #tpu.memory_space<vmem>>, vector<32x32xf32>
    %c96 = arith.constant 96 : index
    %c0_3 = arith.constant 0 : index
    %3 = vector.load %arg2[%c96, %c0_3] : memref<128x32xf32, #tpu.memory_space<vmem>>, vector<32x32xf32>
    %c0_4 = arith.constant 0 : index
    %c0_5 = arith.constant 0 : index
    %4 = vector.load %arg3[%c0_4, %c0_5] : memref<128x1xf32, #tpu.memory_space<vmem>>, vector<32x1xf32>
    %c32_6 = arith.constant 32 : index
    %c0_7 = arith.constant 0 : index
    %5 = vector.load %arg3[%c32_6, %c0_7] : memref<128x1xf32, #tpu.memory_space<vmem>>, vector<32x1xf32>
    %c64_8 = arith.constant 64 : index
    %c0_9 = arith.constant 0 : index
    %6 = vector.load %arg3[%c64_8, %c0_9] : memref<128x1xf32, #tpu.memory_space<vmem>>, vector<32x1xf32>
    %c96_10 = arith.constant 96 : index
    %c0_11 = arith.constant 0 : index
    %7 = vector.load %arg3[%c96_10, %c0_11] : memref<128x1xf32, #tpu.memory_space<vmem>>, vector<32x1xf32>
    %c0_12 = arith.constant 0 : index
    %c0_13 = arith.constant 0 : index
    %8 = vector.load %arg4[%c0_12, %c0_13] : memref<32x1xf32, #tpu.memory_space<vmem>>, vector<32x1xf32>
    %c0_14 = arith.constant 0 : index
    %c0_15 = arith.constant 0 : index
    %9 = vector.load %arg5[%c0_14, %c0_15] : memref<1x1xf32, #tpu.memory_space<vmem>>, vector<1x1xf32>
    %c0_16 = arith.constant 0 : index
    %c0_17 = arith.constant 0 : index
    %10 = vector.load %arg1[%c0_16, %c0_17] : memref<32x16xf32, #tpu.memory_space<vmem>>, vector<32x16xf32>
    %cst = arith.constant dense<0.000000e+00> : vector<32x16xf32>
    %11 = tpu.matmul %0, %10, %cst {dimension_numbers = #tpu.dot_dimension_numbers<[1], [0], [0], [1], [0, 0, 1, 1], [], []>} : vector<32x32xf32>, vector<32x16xf32>, vector<32x16xf32> -> vector<32x16xf32>
    %12 = vector.broadcast %4 : vector<32x1xf32> to vector<32x16xf32>
    %13 = arith.addf %11, %12 : vector<32x16xf32>
    %cst_18 = arith.constant 0.000000e+00 : f32
    %14 = vector.broadcast %cst_18 : f32 to vector<32x16xf32>
    %15 = arith.maximumf %13, %14 : vector<32x16xf32>
    %cst_19 = arith.constant dense<0.000000e+00> : vector<32x16xf32>
    %16 = tpu.matmul %1, %15, %cst_19 {dimension_numbers = #tpu.dot_dimension_numbers<[1], [0], [0], [1], [0, 0, 1, 1], [], []>} : vector<32x32xf32>, vector<32x16xf32>, vector<32x16xf32> -> vector<32x16xf32>
    %17 = vector.broadcast %5 : vector<32x1xf32> to vector<32x16xf32>
    %18 = arith.addf %16, %17 : vector<32x16xf32>
    %cst_20 = arith.constant 0.000000e+00 : f32
    %19 = vector.broadcast %cst_20 : f32 to vector<32x16xf32>
    %20 = arith.maximumf %18, %19 : vector<32x16xf32>
    %cst_21 = arith.constant dense<0.000000e+00> : vector<32x16xf32>
    %21 = tpu.matmul %2, %20, %cst_21 {dimension_numbers = #tpu.dot_dimension_numbers<[1], [0], [0], [1], [0, 0, 1, 1], [], []>} : vector<32x32xf32>, vector<32x16xf32>, vector<32x16xf32> -> vector<32x16xf32>
    %22 = vector.broadcast %6 : vector<32x1xf32> to vector<32x16xf32>
    %23 = arith.addf %21, %22 : vector<32x16xf32>
    %cst_22 = arith.constant 0.000000e+00 : f32
    %24 = vector.broadcast %cst_22 : f32 to vector<32x16xf32>
    %25 = arith.maximumf %23, %24 : vector<32x16xf32>
    %cst_23 = arith.constant dense<0.000000e+00> : vector<32x16xf32>
    %26 = tpu.matmul %3, %25, %cst_23 {dimension_numbers = #tpu.dot_dimension_numbers<[1], [0], [0], [1], [0, 0, 1, 1], [], []>} : vector<32x32xf32>, vector<32x16xf32>, vector<32x16xf32> -> vector<32x16xf32>
    %27 = vector.broadcast %7 : vector<32x1xf32> to vector<32x16xf32>
    %28 = arith.addf %26, %27 : vector<32x16xf32>
    %cst_24 = arith.constant 0.000000e+00 : f32
    %29 = vector.broadcast %cst_24 : f32 to vector<32x16xf32>
    %30 = arith.maximumf %28, %29 : vector<32x16xf32>
    %31 = vector.broadcast %8 : vector<32x1xf32> to vector<32x16xf32>
    %32 = arith.mulf %30, %31 : vector<32x16xf32>
    %cst_25 = arith.constant dense<0.000000e+00> : vector<16xf32>
    %33 = vector.multi_reduction <add>, %32, %cst_25 [0] : vector<32x16xf32> to vector<16xf32>
    %34 = vector.shape_cast %33 : vector<16xf32> to vector<1x16xf32>
    %35 = vector.broadcast %9 : vector<1x1xf32> to vector<1x16xf32>
    %36 = arith.addf %34, %35 : vector<1x16xf32>
    %c0_26 = arith.constant 0 : index
    %c0_27 = arith.constant 0 : index
    %37 = vector.load %arg6[%c0_26, %c0_27] : memref<1x16xf32, #tpu.memory_space<vmem>>, vector<1x16xf32>
    tpu.vector_store %arg6[%c0_26, %c0_27], %36 {strides = array<i32>} : memref<1x16xf32, #tpu.memory_space<vmem>>, vector<1x16xf32>,
    return
  }
  func.func @transform_0(%arg0: i32) -> (i32, i32) {
    %c0_i32 = arith.constant 0 : i32
    %c0_i32_0 = arith.constant 0 : i32
    return %c0_i32, %arg0 : i32, i32
  }
  func.func @transform_1(%arg0: i32) -> (i32, i32) {
    %c0_i32 = arith.constant 0 : i32
    %c0_i32_0 = arith.constant 0 : i32
    %c0_i32_1 = arith.constant 0 : i32
    return %c0_i32, %c0_i32_0 : i32, i32
  }
  func.func @transform_2(%arg0: i32) -> (i32, i32) {
    %c0_i32 = arith.constant 0 : i32
    %c0_i32_0 = arith.constant 0 : i32
    %c0_i32_1 = arith.constant 0 : i32
    return %c0_i32, %c0_i32_0 : i32, i32
  }
  func.func @transform_3(%arg0: i32) -> (i32, i32) {
    %c0_i32 = arith.constant 0 : i32
    %c0_i32_0 = arith.constant 0 : i32
    %c0_i32_1 = arith.constant 0 : i32
    return %c0_i32, %c0_i32_0 : i32, i32
  }
  func.func @transform_4(%arg0: i32) -> (i32, i32) {
    %c0_i32 = arith.constant 0 : i32
    %c0_i32_0 = arith.constant 0 : i32
    %c0_i32_1 = arith.constant 0 : i32
    return %c0_i32, %c0_i32_0 : i32, i32
  }
  func.func @transform_5(%arg0: i32) -> (i32, i32) {
    %c0_i32 = arith.constant 0 : i32
    %c0_i32_0 = arith.constant 0 : i32
    return %c0_i32, %arg0 : i32, i32
  }
}

module attributes {stable_mosaic.version = 11 : i64} {
  func.func @_mlp_kernel(%arg0: i32, %arg1: memref<32x16xf32, #tpu.memory_space<vmem>>, %arg2: memref<128x32xf32, #tpu.memory_space<vmem>>, %arg3: memref<128x1xf32, #tpu.memory_space<vmem>>, %arg4: memref<32x1xf32, #tpu.memory_space<vmem>>, %arg5: memref<1x1xf32, #tpu.memory_space<vmem>>, %arg6: memref<1x16xf32, #tpu.memory_space<vmem>>) attributes {dimension_semantics = [#tpu.dimension_semantics<parallel>], iteration_bounds = array<i64: 1>, scalar_prefetch = 0 : i64, scratch_operands = 0 : i64, tpu.core_type = #tpu.core_type<tc>, window_params = [{transform_indices = @transform_0, window_bounds = array<i64: 32, 16>}, {pipeline_mode = #tpu.pipeline_mode<synchronous>, transform_indices = @transform_1, window_bounds = array<i64: 128, 32>}, {pipeline_mode = #tpu.pipeline_mode<synchronous>, transform_indices = @transform_2, window_bounds = array<i64: 128, 1>}, {pipeline_mode = #tpu.pipeline_mode<synchronous>, transform_indices = @transform_3, window_bounds = array<i64: 32, 1>}, {pipeline_mode = #tpu.pipeline_mode<synchronous>, transform_indices = @transform_4, window_bounds = array<i64: 1, 1>}, {transform_indices = @transform_5, window_bounds = array<i64: 1, 16>}]} {
    %c0 = arith.constant 0 : index
    %c0_0 = arith.constant 0 : index
    %0 = vector.load %arg2[%c0, %c0_0] : memref<128x32xf32, #tpu.memory_space<vmem>>, vector<32x32xf32>
    %c32 = arith.constant 32 : index
    %c0_1 = arith.constant 0 : index
    %1 = vector.load %arg2[%c32, %c0_1] : memref<128x32xf32, #tpu.memory_space<vmem>>, vector<32x32xf32>
    %c64 = arith.constant 64 : index
    %c0_2 = arith.constant 0 : index
    %2 = vector.load %arg2[%c64, %c0_2] : memref<128x32xf32, #tpu.memory_space<vmem>>, vector<32x32xf32>
    %c96 = arith.constant 96 : index
    %c0_3 = arith.constant 0 : index
    %3 = vector.load %arg2[%c96, %c0_3] : memref<128x32xf32, #tpu.memory_space<vmem>>, vector<32x32xf32>
    %c0_4 = arith.constant 0 : index
    %c0_5 = arith.constant 0 : index
    %4 = vector.load %arg3[%c0_4, %c0_5] : memref<128x1xf32, #tpu.memory_space<vmem>>, vector<32x1xf32>
    %c32_6 = arith.constant 32 : index
    %c0_7 = arith.constant 0 : index
    %5 = vector.load %arg3[%c32_6, %c0_7] : memref<128x1xf32, #tpu.memory_space<vmem>>, vector<32x1xf32>
    %c64_8 = arith.constant 64 : index
    %c0_9 = arith.constant 0 : index
    %6 = vector.load %arg3[%c64_8, %c0_9] : memref<128x1xf32, #tpu.memory_space<vmem>>, vector<32x1xf32>
    %c96_10 = arith.constant 96 : index
    %c0_11 = arith.constant 0 : index
    %7 = vector.load %arg3[%c96_10, %c0_11] : memref<128x1xf32, #tpu.memory_space<vmem>>, vector<32x1xf32>
    %c0_12 = arith.constant 0 : index
    %c0_13 = arith.constant 0 : index
    %8 = vector.load %arg4[%c0_12, %c0_13] : memref<32x1xf32, #tpu.memory_space<vmem>>, vector<32x1xf32>
    %c0_14 = arith.constant 0 : index
    %c0_15 = arith.constant 0 : index
    %9 = vector.load %arg5[%c0_14, %c0_15] : memref<1x1xf32, #tpu.memory_space<vmem>>, vector<1x1xf32>
    %c0_16 = arith.constant 0 : index
    %c0_17 = arith.constant 0 : index
    %10 = vector.load %arg1[%c0_16, %c0_17] : memref<32x16xf32, #tpu.memory_space<vmem>>, vector<32x16xf32>
    %cst = arith.constant dense<0.000000e+00> : vector<32x16xf32>
    %11 = tpu.matmul %0, %10, %cst {dimension_numbers = #tpu.dot_dimension_numbers<[1], [0], [0], [1], [0, 0, 1, 1], [], []>} : vector<32x32xf32>, vector<32x16xf32>, vector<32x16xf32> -> vector<32x16xf32>
    %12 = vector.broadcast %4 : vector<32x1xf32> to vector<32x16xf32>
    %13 = arith.addf %11, %12 : vector<32x16xf32>
    %cst_18 = arith.constant 0.000000e+00 : f32
    %14 = vector.broadcast %cst_18 : f32 to vector<32x16xf32>
    %15 = arith.maximumf %13, %14 : vector<32x16xf32>
    %cst_19 = arith.constant dense<0.000000e+00> : vector<32x16xf32>
    %16 = tpu.matmul %1, %15, %cst_19 {dimension_numbers = #tpu.dot_dimension_numbers<[1], [0], [0], [1], [0, 0, 1, 1], [], []>} : vector<32x32xf32>, vector<32x16xf32>, vector<32x16xf32> -> vector<32x16xf32>
    %17 = vector.broadcast %5 : vector<32x1xf32> to vector<32x16xf32>
    %18 = arith.addf %16, %17 : vector<32x16xf32>
    %cst_20 = arith.constant 0.000000e+00 : f32
    %19 = vector.broadcast %cst_20 : f32 to vector<32x16xf32>
    %20 = arith.maximumf %18, %19 : vector<32x16xf32>
    %cst_21 = arith.constant dense<0.000000e+00> : vector<32x16xf32>
    %21 = tpu.matmul %2, %20, %cst_21 {dimension_numbers = #tpu.dot_dimension_numbers<[1], [0], [0], [1], [0, 0, 1, 1], [], []>} : vector<32x32xf32>, vector<32x16xf32>, vector<32x16xf32> -> vector<32x16xf32>
    %22 = vector.broadcast %6 : vector<32x1xf32> to vector<32x16xf32>
    %23 = arith.addf %21, %22 : vector<32x16xf32>
    %cst_22 = arith.constant 0.000000e+00 : f32
    %24 = vector.broadcast %cst_22 : f32 to vector<32x16xf32>
    %25 = arith.maximumf %23, %24 : vector<32x16xf32>
    %cst_23 = arith.constant dense<0.000000e+00> : vector<32x16xf32>
    %26 = tpu.matmul %3, %25, %cst_23 {dimension_numbers = #tpu.dot_dimension_numbers<[1], [0], [0], [1], [0, 0, 1, 1], [], []>} : vector<32x32xf32>, vector<32x16xf32>, vector<32x16xf32> -> vector<32x16xf32>
    %27 = vector.broadcast %7 : vector<32x1xf32> to vector<32x16xf32>
    %28 = arith.addf %26, %27 : vector<32x16xf32>
    %cst_24 = arith.constant 0.000000e+00 : f32
    %29 = vector.broadcast %cst_24 : f32 to vector<32x16xf32>
    %30 = arith.maximumf %28, %29 : vector<32x16xf32>
    %31 = vector.broadcast %8 : vector<32x1xf32> to vector<32x16xf32>
    %32 = arith.mulf %30, %31 : vector<32x16xf32>
    %cst_25 = arith.constant dense<0.000000e+00> : vector<16xf32>
    %33 = vector.multi_reduction <add>, %32, %cst_25 [0] : vector<32x16xf32> to vector<16xf32>
    %34 = vector.shape_cast %33 : vector<16xf32> to vector<1x16xf32>
    %35 = vector.broadcast %9 : vector<1x1xf32> to vector<1x16xf32>
    %36 = arith.addf %34, %35 : vector<1x16xf32>
    %c0_26 = arith.constant 0 : index
    %c0_27 = arith.constant 0 : index
    %37 = vector.load %arg6[%c0_26, %c0_27] : memref<1x16xf32, #tpu.memory_space<vmem>>, vector<1x16xf32>
    tpu.vector_store %arg6[%c0_26, %c0_27], %36 {strides = array<i32>} : memref<1x16xf32, #tpu.memory_space<vmem>>, vector<1x16xf32>,
    return
  }
  func.func @transform_0(%arg0: i32) -> (i32, i32) {
    %c0_i32 = arith.constant 0 : i32
    %c0_i32_0 = arith.constant 0 : i32
    return %c0_i32, %arg0 : i32, i32
  }
  func.func @transform_1(%arg0: i32) -> (i32, i32) {
    %c0_i32 = arith.constant 0 : i32
    %c0_i32_0 = arith.constant 0 : i32
    %c0_i32_1 = arith.constant 0 : i32
    return %c0_i32, %c0_i32_0 : i32, i32
  }
  func.func @transform_2(%arg0: i32) -> (i32, i32) {
    %c0_i32 = arith.constant 0 : i32
    %c0_i32_0 = arith.constant 0 : i32
    %c0_i32_1 = arith.constant 0 : i32
    return %c0_i32, %c0_i32_0 : i32, i32
  }
  func.func @transform_3(%arg0: i32) -> (i32, i32) {
    %c0_i32 = arith.constant 0 : i32
    %c0_i32_0 = arith.constant 0 : i32
    %c0_i32_1 = arith.constant 0 : i32
    return %c0_i32, %c0_i32_0 : i32, i32
  }
  func.func @transform_4(%arg0: i32) -> (i32, i32) {
    %c0_i32 = arith.constant 0 : i32
    %c0_i32_0 = arith.constant 0 : i32
    %c0_i32_1 = arith.constant 0 : i32
    return %c0_i32, %c0_i32_0 : i32, i32
  }
  func.func @transform_5(%arg0: i32) -> (i32, i32) {
    %c0_i32 = arith.constant 0 : i32
    %c0_i32_0 = arith.constant 0 : i32
    return %c0_i32, %arg0 : i32, i32
  }
}

</mosaic_0001>

<llo_original>
// kernel: tpu_custom_call.1
$region0: #{tpu_custom_call.1}
  #allocation0 [shape = 'u32[]', space=smem, size = 0x4, offset = 0x4, fixed_abs, tag = 'smem constant byte address 0x4 - core index']
  #allocation1 [shape = 'u32[144,128]{1,0:T(1,128)}', space=vmem, size = 0x12000, scoped, tag = 'internal scratch']
  #allocation2 [shape = 'f32[1,1]{1,0:T(1,128)S(1)}', space=vmem, size = 0x200, scoped, tag = 'scoped memory for tpu_custom_call.1']
  %s0 = inlined_call_operand.vmem [shape: f32[32,16], index: 0, kind: input, shape index: {}]
  %s1 = inlined_call_operand.vmem [shape: f32[128,32], index: 1, kind: input, shape index: {}]
  %s2 = inlined_call_operand.vmem [shape: f32[128,1], index: 2, kind: input, shape index: {}]
  %s3 = inlined_call_operand.vmem [shape: f32[32,1], index: 3, kind: input, shape index: {}]
  %s4 = inlined_call_operand.<no memory space> [shape: f32[1,1], index: 4, kind: input, shape index: {}]
  %s5 = inlined_call_operand.hbm [shape: f32[1,16], index: 5, kind: output, shape index: {}]
  %s6 = sld [smem:[#allocation0]]
  $region30: #{tpu_custom_call.1} parent=0
    _
  %s8 = ssub.s32 1, %s6
  %s9 = scalar_select 0, %s8, %s6
  %v10 = vstv %s4
  %11 = vst [vmem:[#allocation2] sm:$0x1] %v10
  $region1: #{tpu_custom_call.1} parent=0
    #allocation3 [shape = 'u8[512]{0}', space=vmem, size = 0x400, scoped, tag = 'output window, operand 0, single buffered']
    #allocation4 [shape = 's32[1]{0}', space=sflag, size = 0x4, scoped, tag = 'scoped memory for tpu_custom_call.1']
    %12 = vsyncpa [#allocation4], 0
    // Predicated region
    $region2: #{tpu_custom_call.1} parent=1 // pred_check
      _
    $region3: #{tpu_custom_call.1} parent=1 // pred_check_branch
      %14 = sbr.rel (0) target = $region5
    $region4: #{tpu_custom_call.1} parent=1 // pred_region
      _
    $region5: #{tpu_custom_call.1} parent=1 // pred_fallthru
      _
    // Predicated region
    $region6: #{tpu_custom_call.1} parent=1 // pred_check
      _
    $region7: #{tpu_custom_call.1} parent=1 // pred_check_branch
      %16 = sbr.rel (0) target = $region9
    $region8: #{tpu_custom_call.1} parent=1 // pred_region
      _
    $region9: #{tpu_custom_call.1} parent=1 // pred_fallthru
      _
    // Predicated region
    $region10: #{tpu_custom_call.1} parent=1 // pred_check
      _
    $region11: #{tpu_custom_call.1} parent=1 // pred_check_branch
      %18 = sbr.rel (0) target = $region13
    $region12: #{tpu_custom_call.1} parent=1 // pred_region
      _
    $region13: #{tpu_custom_call.1} parent=1 // pred_fallthru
      _
    // Predicated region
    $region14: #{tpu_custom_call.1} parent=1 // pred_check
      _
    $region15: #{tpu_custom_call.1} parent=1 // pred_check_branch
      %20 = sbr.rel (0) target = $region17
    $region16: #{tpu_custom_call.1} parent=1 // pred_region
      _
    $region17: #{tpu_custom_call.1} parent=1 // pred_fallthru
      _
    // Predicated region
    $region18: #{tpu_custom_call.1} parent=1 // pred_check
      _
    $region19: #{tpu_custom_call.1} parent=1 // pred_check_branch
      %22 = sbr.rel (0) target = $region21
    $region20: #{tpu_custom_call.1} parent=1 // pred_region
      _
    $region21: #{tpu_custom_call.1} parent=1 // pred_fallthru
      _
    %v23 = vld [vmem:[%s1] sm:$0xff]
    %v24 = vld [vmem:[%s1 + $0x8] sm:$0xff]
    %v25 = vld [vmem:[%s1 + $0x10] sm:$0xff]
    %v26 = vld [vmem:[%s1 + $0x18] sm:$0xff]
    %v27 = vld [vmem:[%s1 + $0x20] sm:$0xff]
    %v28 = vld [vmem:[%s1 + $0x28] sm:$0xff]
    %v29 = vld [vmem:[%s1 + $0x30] sm:$0xff]
    %v30 = vld [vmem:[%s1 + $0x38] sm:$0xff]
    %v31 = vld [vmem:[%s1 + $0x40] sm:$0xff]
    %v32 = vld [vmem:[%s1 + $0x48] sm:$0xff]
    %v33 = vld [vmem:[%s1 + $0x50] sm:$0xff]
    %v34 = vld [vmem:[%s1 + $0x58] sm:$0xff]
    %v35 = vld [vmem:[%s1 + $0x60] sm:$0xff]
    %v36 = vld [vmem:[%s1 + $0x68] sm:$0xff]
    %v37 = vld [vmem:[%s1 + $0x70] sm:$0xff]
    %v38 = vld [vmem:[%s1 + $0x78] sm:$0xff]
    %v39 = vld [vmem:[%s2] sm:$0xff]
    %v40 = vld [vmem:[%s2 + $0x8] sm:$0xff]
    %v41 = vld [vmem:[%s2 + $0x10] sm:$0xff]
    %v42 = vld [vmem:[%s2 + $0x18] sm:$0xff]
    %v43 = vld [vmem:[%s2 + $0x20] sm:$0xff]
    %v44 = vld [vmem:[%s2 + $0x28] sm:$0xff]
    %v45 = vld [vmem:[%s2 + $0x30] sm:$0xff]
    %v46 = vld [vmem:[%s2 + $0x38] sm:$0xff]
    %v47 = vld [vmem:[%s2 + $0x40] sm:$0xff]
    %v48 = vld [vmem:[%s2 + $0x48] sm:$0xff]
    %v49 = vld [vmem:[%s2 + $0x50] sm:$0xff]
    %v50 = vld [vmem:[%s2 + $0x58] sm:$0xff]
    %v51 = vld [vmem:[%s2 + $0x60] sm:$0xff]
    %v52 = vld [vmem:[%s2 + $0x68] sm:$0xff]
    %v53 = vld [vmem:[%s2 + $0x70] sm:$0xff]
    %v54 = vld [vmem:[%s2 + $0x78] sm:$0xff]
    %v55 = vld [vmem:[%s3] sm:$0xff]
    %v56 = vld [vmem:[%s3 + $0x8] sm:$0xff]
    %v57 = vld [vmem:[%s3 + $0x10] sm:$0xff]
    %v58 = vld [vmem:[%s3 + $0x18] sm:$0xff]
    %v59 = vld [vmem:[#allocation2] sm:$0x1]
    %v60 = vld [vmem:[%s0] sm:$0xff]
    %v61 = vld [vmem:[%s0 + $0x8] sm:$0xff]
    %v62 = vld [vmem:[%s0 + $0x10] sm:$0xff]
    %v63 = vld [vmem:[%s0 + $0x18] sm:$0xff]
    %65 = vset.pattern.permute.xlu0 0
    %66 = vperm.xlu0 %65, %v39
    %v67 = vpop.permute.xlu0 %66
    %70 = vset.pattern.permute.xlu0 0
    %71 = vperm.xlu0 %70, %v40
    %v72 = vpop.permute.xlu0 %71
    %75 = vset.pattern.permute.xlu0 0
    %76 = vperm.xlu0 %75, %v41
    %v77 = vpop.permute.xlu0 %76
    %80 = vset.pattern.permute.xlu0 0
    %81 = vperm.xlu0 %80, %v42
    %v82 = vpop.permute.xlu0 %81
    %vm84 = vcmask 261120
    %v86 = vsel %vm84, %v23, 0
    %v89 = vsel %vm84, %v24, 0
    %v92 = vsel %vm84, %v25, 0
    %v95 = vsel %vm84, %v26, 0
    %97 = vmatprep.subr.mxu0 0.0
    %98 = vmatpush1.msra.mxu0 0.0
    %99 = vmatprep.subr.mxu0 0.0
    %100 = vmatpush1.msra.mxu0 0.0
    %101 = vmatprep.subr.mxu0 0.0
    %102 = vmatpush1.msra.mxu0 0.0
    %103 = vmatprep.subr.mxu0 0.0
    %104 = vmatpush1.msra.mxu0 0.0
    %105 = vmatprep.subr.mxu0 0.0
    %106 = vmatpush1.msra.mxu0 0.0
    %107 = vmatprep.subr.mxu0 0.0
    %108 = vmatpush1.msra.mxu0 0.0
    %109 = vmatprep.subr.mxu0 0.0
    %110 = vmatpush1.msra.mxu0 0.0
    %111 = vmatprep.subr.mxu0 0.0
    %112 = vmatpush1.msra.mxu0 0.0
    %113 = vmatprep.subr.mxu0 0.0
    %114 = vmatpush1.msra.mxu0 0.0
    %115 = vmatprep.subr.mxu0 0.0
    %116 = vmatpush1.msra.mxu0 0.0
    %117 = vmatprep.subr.mxu0 0.0
    %118 = vmatpush1.msra.mxu0 0.0
    %119 = vmatprep.subr.mxu0 0.0
    %120 = vmatpush1.msra.mxu0 0.0
    %121 = vmatprep.subr.mxu0 0.0
    %122 = vmatpush1.msra.mxu0 %v63
    %123 = vmatprep.subr.mxu0 0.0
    %124 = vmatpush1.msra.mxu0 %v62
    %125 = vmatprep.subr.mxu0 0.0
    %126 = vmatpush1.msra.mxu0 %v61
    %127 = vmatprep.subr.mxu0 0.0
    %128 = vmatpush1.msra.mxu0 %v60
    %129 = vmatprep.subr.mxu0 0.0
    %130 = vmatpush2.msra.mxu0 0.0
    %131 = vmatprep.subr.mxu0 0.0
    %132 = vmatpush2.msra.mxu0 0.0
    %133 = vmatprep.subr.mxu0 0.0
    %134 = vmatpush2.msra.mxu0 0.0
    %135 = vmatprep.subr.mxu0 0.0
    %136 = vmatpush2.msra.mxu0 0.0
    %137 = vmatprep.subr.mxu0 0.0
    %138 = vmatpush2.msra.mxu0 0.0
    %139 = vmatprep.subr.mxu0 0.0
    %140 = vmatpush2.msra.mxu0 0.0
    %141 = vmatprep.subr.mxu0 0.0
    %142 = vmatpush2.msra.mxu0 0.0
    %143 = vmatprep.subr.mxu0 0.0
    %144 = vmatpush2.msra.mxu0 0.0
    %145 = vmatprep.subr.mxu0 0.0
    %146 = vmatpush2.msra.mxu0 0.0
    %147 = vmatprep.subr.mxu0 0.0
    %148 = vmatpush2.msra.mxu0 0.0
    %149 = vmatprep.subr.mxu0 0.0
    %150 = vmatpush2.msra.mxu0 0.0
    %151 = vmatprep.subr.mxu0 0.0
    %152 = vmatpush2.msra.mxu0 0.0
    %153 = vmatprep.subr.mxu0 0.0
    %154 = vmatpush2.msra.mxu0 0.0
    %155 = vmatprep.subr.mxu0 0.0
    %156 = vmatpush2.msra.mxu0 0.0
    %157 = vmatprep.subr.mxu0 0.0
    %158 = vmatpush2.msra.mxu0 0.0
    %159 = vmatprep.subr.mxu0 0.0
    %160 = vmatpush2.msra.mxu0 0.0
    %161 = vmatprep.mubr.f32.mxu0 0.0
    %162 = vmatmul.mubr.f32.gmra.mxu0 %v86
    %v163 = vpop.f32.mrf.mxu0
    %v164 = vadd.f32 %v67, %v163
    %v165 = vpop.f32.mrf.mxu0
    %166 = vmatprep.mubr.f32.mxu0 0.0
    %167 = vmatmul.mubr.f32.gmra.mxu0 %v89
    %v168 = vpop.f32.mrf.mxu0
    %v169 = vadd.f32 %v72, %v168
    %v170 = vpop.f32.mrf.mxu0
    %171 = vmatprep.mubr.f32.mxu0 0.0
    %172 = vmatmul.mubr.f32.gmra.mxu0 %v92
    %v173 = vpop.f32.mrf.mxu0
    %v174 = vadd.f32 %v77, %v173
    %v175 = vpop.f32.mrf.mxu0
    %176 = vmatprep.mubr.f32.mxu0 0.0
    %177 = vmatmul.mubr.f32.gmra.mxu0 %v95
    %v178 = vpop.f32.mrf.mxu0
    %v179 = vadd.f32 %v82, %v178
    %v180 = vpop.f32.mrf.mxu0
    %181 = vdwg.mxu0
    %v182 = vmax.f32 %v164, 0.0
    %v183 = vmax.f32 %v169, 0.0
    %v184 = vmax.f32 %v174, 0.0
    %v185 = vmax.f32 %v179, 0.0
    %187 = vset.pattern.permute.xlu0 0
    %188 = vperm.xlu0 %187, %v43
    %v189 = vpop.permute.xlu0 %188
    %192 = vset.pattern.permute.xlu0 0
    %193 = vperm.xlu0 %192, %v44
    %v194 = vpop.permute.xlu0 %193
    %197 = vset.pattern.permute.xlu0 0
    %198 = vperm.xlu0 %197, %v45
    %v199 = vpop.permute.xlu0 %198
    %202 = vset.pattern.permute.xlu0 0
    %203 = vperm.xlu0 %202, %v46
    %v204 = vpop.permute.xlu0 %203
    %v207 = vsel %vm84, %v27, 0
    %v210 = vsel %vm84, %v28, 0
    %v213 = vsel %vm84, %v29, 0
    %v216 = vsel %vm84, %v30, 0
    %218 = vmatprep.subr.mxu0 0.0
    %219 = vmatpush1.msra.mxu0 0.0
    %220 = vmatprep.subr.mxu0 0.0
    %221 = vmatpush1.msra.mxu0 0.0
    %222 = vmatprep.subr.mxu0 0.0
    %223 = vmatpush1.msra.mxu0 0.0
    %224 = vmatprep.subr.mxu0 0.0
    %225 = vmatpush1.msra.mxu0 0.0
    %226 = vmatprep.subr.mxu0 0.0
    %227 = vmatpush1.msra.mxu0 0.0
    %228 = vmatprep.subr.mxu0 0.0
    %229 = vmatpush1.msra.mxu0 0.0
    %230 = vmatprep.subr.mxu0 0.0
    %231 = vmatpush1.msra.mxu0 0.0
    %232 = vmatprep.subr.mxu0 0.0
    %233 = vmatpush1.msra.mxu0 0.0
    %234 = vmatprep.subr.mxu0 0.0
    %235 = vmatpush1.msra.mxu0 0.0
    %236 = vmatprep.subr.mxu0 0.0
    %237 = vmatpush1.msra.mxu0 0.0
    %238 = vmatprep.subr.mxu0 0.0
    %239 = vmatpush1.msra.mxu0 0.0
    %240 = vmatprep.subr.mxu0 0.0
    %241 = vmatpush1.msra.mxu0 0.0
    %242 = vmatprep.subr.mxu0 0.0
    %243 = vmatpush1.msra.mxu0 %v185
    %244 = vmatprep.subr.mxu0 0.0
    %245 = vmatpush1.msra.mxu0 %v184
    %246 = vmatprep.subr.mxu0 0.0
    %247 = vmatpush1.msra.mxu0 %v183
    %248 = vmatprep.subr.mxu0 0.0
    %249 = vmatpush1.msra.mxu0 %v182
    %250 = vmatprep.subr.mxu0 0.0
    %251 = vmatpush2.msra.mxu0 0.0
    %252 = vmatprep.subr.mxu0 0.0
    %253 = vmatpush2.msra.mxu0 0.0
    %254 = vmatprep.subr.mxu0 0.0
    %255 = vmatpush2.msra.mxu0 0.0
    %256 = vmatprep.subr.mxu0 0.0
    %257 = vmatpush2.msra.mxu0 0.0
    %258 = vmatprep.subr.mxu0 0.0
    %259 = vmatpush2.msra.mxu0 0.0
    %260 = vmatprep.subr.mxu0 0.0
    %261 = vmatpush2.msra.mxu0 0.0
    %262 = vmatprep.subr.mxu0 0.0
    %263 = vmatpush2.msra.mxu0 0.0
    %264 = vmatprep.subr.mxu0 0.0
    %265 = vmatpush2.msra.mxu0 0.0
    %266 = vmatprep.subr.mxu0 0.0
    %267 = vmatpush2.msra.mxu0 0.0
    %268 = vmatprep.subr.mxu0 0.0
    %269 = vmatpush2.msra.mxu0 0.0
    %270 = vmatprep.subr.mxu0 0.0
    %271 = vmatpush2.msra.mxu0 0.0
    %272 = vmatprep.subr.mxu0 0.0
    %273 = vmatpush2.msra.mxu0 0.0
    %274 = vmatprep.subr.mxu0 0.0
    %275 = vmatpush2.msra.mxu0 0.0
    %276 = vmatprep.subr.mxu0 0.0
    %277 = vmatpush2.msra.mxu0 0.0
    %278 = vmatprep.subr.mxu0 0.0
    %279 = vmatpush2.msra.mxu0 0.0
    %280 = vmatprep.subr.mxu0 0.0
    %281 = vmatpush2.msra.mxu0 0.0
    %282 = vmatprep.mubr.f32.mxu0 0.0
    %283 = vmatmul.mubr.f32.gmra.mxu0 %v207
    %v284 = vpop.f32.mrf.mxu0
    %v285 = vadd.f32 %v189, %v284
    %v286 = vpop.f32.mrf.mxu0
    %287 = vmatprep.mubr.f32.mxu0 0.0
    %288 = vmatmul.mubr.f32.gmra.mxu0 %v210
    %v289 = vpop.f32.mrf.mxu0
    %v290 = vadd.f32 %v194, %v289
    %v291 = vpop.f32.mrf.mxu0
    %292 = vmatprep.mubr.f32.mxu0 0.0
    %293 = vmatmul.mubr.f32.gmra.mxu0 %v213
    %v294 = vpop.f32.mrf.mxu0
    %v295 = vadd.f32 %v199, %v294
    %v296 = vpop.f32.mrf.mxu0
    %297 = vmatprep.mubr.f32.mxu0 0.0
    %298 = vmatmul.mubr.f32.gmra.mxu0 %v216
    %v299 = vpop.f32.mrf.mxu0
    %v300 = vadd.f32 %v204, %v299
    %v301 = vpop.f32.mrf.mxu0
    %302 = vdwg.mxu0
    %v303 = vmax.f32 %v285, 0.0
    %v304 = vmax.f32 %v290, 0.0
    %v305 = vmax.f32 %v295, 0.0
    %v306 = vmax.f32 %v300, 0.0
    %308 = vset.pattern.permute.xlu0 0
    %309 = vperm.xlu0 %308, %v47
    %v310 = vpop.permute.xlu0 %309
    %313 = vset.pattern.permute.xlu0 0
    %314 = vperm.xlu0 %313, %v48
    %v315 = vpop.permute.xlu0 %314
    %318 = vset.pattern.permute.xlu0 0
    %319 = vperm.xlu0 %318, %v49
    %v320 = vpop.permute.xlu0 %319
    %323 = vset.pattern.permute.xlu0 0
    %324 = vperm.xlu0 %323, %v50
    %v325 = vpop.permute.xlu0 %324
    %v328 = vsel %vm84, %v31, 0
    %v331 = vsel %vm84, %v32, 0
    %v334 = vsel %vm84, %v33, 0
    %v337 = vsel %vm84, %v34, 0
    %339 = vmatprep.subr.mxu0 0.0
    %340 = vmatpush1.msra.mxu0 0.0
    %341 = vmatprep.subr.mxu0 0.0
    %342 = vmatpush1.msra.mxu0 0.0
    %343 = vmatprep.subr.mxu0 0.0
    %344 = vmatpush1.msra.mxu0 0.0
    %345 = vmatprep.subr.mxu0 0.0
    %346 = vmatpush1.msra.mxu0 0.0
    %347 = vmatprep.subr.mxu0 0.0
    %348 = vmatpush1.msra.mxu0 0.0
    %349 = vmatprep.subr.mxu0 0.0
    %350 = vmatpush1.msra.mxu0 0.0
    %351 = vmatprep.subr.mxu0 0.0
    %352 = vmatpush1.msra.mxu0 0.0
    %353 = vmatprep.subr.mxu0 0.0
    %354 = vmatpush1.msra.mxu0 0.0
    %355 = vmatprep.subr.mxu0 0.0
    %356 = vmatpush1.msra.mxu0 0.0
    %357 = vmatprep.subr.mxu0 0.0
    %358 = vmatpush1.msra.mxu0 0.0
    %359 = vmatprep.subr.mxu0 0.0
    %360 = vmatpush1.msra.mxu0 0.0
    %361 = vmatprep.subr.mxu0 0.0
    %362 = vmatpush1.msra.mxu0 0.0
    %363 = vmatprep.subr.mxu0 0.0
    %364 = vmatpush1.msra.mxu0 %v306
    %365 = vmatprep.subr.mxu0 0.0
    %366 = vmatpush1.msra.mxu0 %v305
    %367 = vmatprep.subr.mxu0 0.0
    %368 = vmatpush1.msra.mxu0 %v304
    %369 = vmatprep.subr.mxu0 0.0
    %370 = vmatpush1.msra.mxu0 %v303
    %371 = vmatprep.subr.mxu0 0.0
    %372 = vmatpush2.msra.mxu0 0.0
    %373 = vmatprep.subr.mxu0 0.0
    %374 = vmatpush2.msra.mxu0 0.0
    %375 = vmatprep.subr.mxu0 0.0
    %376 = vmatpush2.msra.mxu0 0.0
    %377 = vmatprep.subr.mxu0 0.0
    %378 = vmatpush2.msra.mxu0 0.0
    %379 = vmatprep.subr.mxu0 0.0
    %380 = vmatpush2.msra.mxu0 0.0
    %381 = vmatprep.subr.mxu0 0.0
    %382 = vmatpush2.msra.mxu0 0.0
    %383 = vmatprep.subr.mxu0 0.0
    %384 = vmatpush2.msra.mxu0 0.0
    %385 = vmatprep.subr.mxu0 0.0
    %386 = vmatpush2.msra.mxu0 0.0
    %387 = vmatprep.subr.mxu0 0.0
    %388 = vmatpush2.msra.mxu0 0.0
    %389 = vmatprep.subr.mxu0 0.0
    %390 = vmatpush2.msra.mxu0 0.0
    %391 = vmatprep.subr.mxu0 0.0
    %392 = vmatpush2.msra.mxu0 0.0
    %393 = vmatprep.subr.mxu0 0.0
    %394 = vmatpush2.msra.mxu0 0.0
    %395 = vmatprep.subr.mxu0 0.0
    %396 = vmatpush2.msra.mxu0 0.0
    %397 = vmatprep.subr.mxu0 0.0
    %398 = vmatpush2.msra.mxu0 0.0
    %399 = vmatprep.subr.mxu0 0.0
    %400 = vmatpush2.msra.mxu0 0.0
    %401 = vmatprep.subr.mxu0 0.0
    %402 = vmatpush2.msra.mxu0 0.0
    %403 = vmatprep.mubr.f32.mxu0 0.0
    %404 = vmatmul.mubr.f32.gmra.mxu0 %v328
    %v405 = vpop.f32.mrf.mxu0
    %v406 = vadd.f32 %v310, %v405
    %v407 = vpop.f32.mrf.mxu0
    %408 = vmatprep.mubr.f32.mxu0 0.0
    %409 = vmatmul.mubr.f32.gmra.mxu0 %v331
    %v410 = vpop.f32.mrf.mxu0
    %v411 = vadd.f32 %v315, %v410
    %v412 = vpop.f32.mrf.mxu0
    %413 = vmatprep.mubr.f32.mxu0 0.0
    %414 = vmatmul.mubr.f32.gmra.mxu0 %v334
    %v415 = vpop.f32.mrf.mxu0
    %v416 = vadd.f32 %v320, %v415
    %v417 = vpop.f32.mrf.mxu0
    %418 = vmatprep.mubr.f32.mxu0 0.0
    %419 = vmatmul.mubr.f32.gmra.mxu0 %v337
    %v420 = vpop.f32.mrf.mxu0
    %v421 = vadd.f32 %v325, %v420
    %v422 = vpop.f32.mrf.mxu0
    %423 = vdwg.mxu0
    %v424 = vmax.f32 %v406, 0.0
    %v425 = vmax.f32 %v411, 0.0
    %v426 = vmax.f32 %v416, 0.0
    %v427 = vmax.f32 %v421, 0.0
    %429 = vset.pattern.permute.xlu0 0
    %430 = vperm.xlu0 %429, %v51
    %v431 = vpop.permute.xlu0 %430
    %434 = vset.pattern.permute.xlu0 0
    %435 = vperm.xlu0 %434, %v52
    %v436 = vpop.permute.xlu0 %435
    %439 = vset.pattern.permute.xlu0 0
    %440 = vperm.xlu0 %439, %v53
    %v441 = vpop.permute.xlu0 %440
    %444 = vset.pattern.permute.xlu0 0
    %445 = vperm.xlu0 %444, %v54
    %v446 = vpop.permute.xlu0 %445
    %v449 = vsel %vm84, %v35, 0
    %v452 = vsel %vm84, %v36, 0
    %v455 = vsel %vm84, %v37, 0
    %v458 = vsel %vm84, %v38, 0
    %460 = vmatprep.subr.mxu0 0.0
    %461 = vmatpush1.msra.mxu0 0.0
    %462 = vmatprep.subr.mxu0 0.0
    %463 = vmatpush1.msra.mxu0 0.0
    %464 = vmatprep.subr.mxu0 0.0
    %465 = vmatpush1.msra.mxu0 0.0
    %466 = vmatprep.subr.mxu0 0.0
    %467 = vmatpush1.msra.mxu0 0.0
    %468 = vmatprep.subr.mxu0 0.0
    %469 = vmatpush1.msra.mxu0 0.0
    %470 = vmatprep.subr.mxu0 0.0
    %471 = vmatpush1.msra.mxu0 0.0
    %472 = vmatprep.subr.mxu0 0.0
    %473 = vmatpush1.msra.mxu0 0.0
    %474 = vmatprep.subr.mxu0 0.0
    %475 = vmatpush1.msra.mxu0 0.0
    %476 = vmatprep.subr.mxu0 0.0
    %477 = vmatpush1.msra.mxu0 0.0
    %478 = vmatprep.subr.mxu0 0.0
    %479 = vmatpush1.msra.mxu0 0.0
    %480 = vmatprep.subr.mxu0 0.0
    %481 = vmatpush1.msra.mxu0 0.0
    %482 = vmatprep.subr.mxu0 0.0
    %483 = vmatpush1.msra.mxu0 0.0
    %484 = vmatprep.subr.mxu0 0.0
    %485 = vmatpush1.msra.mxu0 %v427
    %486 = vmatprep.subr.mxu0 0.0
    %487 = vmatpush1.msra.mxu0 %v426
    %488 = vmatprep.subr.mxu0 0.0
    %489 = vmatpush1.msra.mxu0 %v425
    %490 = vmatprep.subr.mxu0 0.0
    %491 = vmatpush1.msra.mxu0 %v424
    %492 = vmatprep.subr.mxu0 0.0
    %493 = vmatpush2.msra.mxu0 0.0
    %494 = vmatprep.subr.mxu0 0.0
    %495 = vmatpush2.msra.mxu0 0.0
    %496 = vmatprep.subr.mxu0 0.0
    %497 = vmatpush2.msra.mxu0 0.0
    %498 = vmatprep.subr.mxu0 0.0
    %499 = vmatpush2.msra.mxu0 0.0
    %500 = vmatprep.subr.mxu0 0.0
    %501 = vmatpush2.msra.mxu0 0.0
    %502 = vmatprep.subr.mxu0 0.0
    %503 = vmatpush2.msra.mxu0 0.0
    %504 = vmatprep.subr.mxu0 0.0
    %505 = vmatpush2.msra.mxu0 0.0
    %506 = vmatprep.subr.mxu0 0.0
    %507 = vmatpush2.msra.mxu0 0.0
    %508 = vmatprep.subr.mxu0 0.0
    %509 = vmatpush2.msra.mxu0 0.0
    %510 = vmatprep.subr.mxu0 0.0
    %511 = vmatpush2.msra.mxu0 0.0
    %512 = vmatprep.subr.mxu0 0.0
    %513 = vmatpush2.msra.mxu0 0.0
    %514 = vmatprep.subr.mxu0 0.0
    %515 = vmatpush2.msra.mxu0 0.0
    %516 = vmatprep.subr.mxu0 0.0
    %517 = vmatpush2.msra.mxu0 0.0
    %518 = vmatprep.subr.mxu0 0.0
    %519 = vmatpush2.msra.mxu0 0.0
    %520 = vmatprep.subr.mxu0 0.0
    %521 = vmatpush2.msra.mxu0 0.0
    %522 = vmatprep.subr.mxu0 0.0
    %523 = vmatpush2.msra.mxu0 0.0
    %524 = vmatprep.mubr.f32.mxu0 0.0
    %525 = vmatmul.mubr.f32.gmra.mxu0 %v449
    %v526 = vpop.f32.mrf.mxu0
    %v527 = vadd.f32 %v431, %v526
    %v528 = vpop.f32.mrf.mxu0
    %529 = vmatprep.mubr.f32.mxu0 0.0
    %530 = vmatmul.mubr.f32.gmra.mxu0 %v452
    %v531 = vpop.f32.mrf.mxu0
    %v532 = vadd.f32 %v436, %v531
    %v533 = vpop.f32.mrf.mxu0
    %534 = vmatprep.mubr.f32.mxu0 0.0
    %535 = vmatmul.mubr.f32.gmra.mxu0 %v455
    %v536 = vpop.f32.mrf.mxu0
    %v537 = vadd.f32 %v441, %v536
    %v538 = vpop.f32.mrf.mxu0
    %539 = vmatprep.mubr.f32.mxu0 0.0
    %540 = vmatmul.mubr.f32.gmra.mxu0 %v458
    %v541 = vpop.f32.mrf.mxu0
    %v542 = vadd.f32 %v446, %v541
    %v543 = vpop.f32.mrf.mxu0
    %544 = vdwg.mxu0
    %v545 = vmax.f32 %v527, 0.0
    %v546 = vmax.f32 %v532, 0.0
    %v547 = vmax.f32 %v537, 0.0
    %v548 = vmax.f32 %v542, 0.0
    %550 = vset.pattern.permute.xlu0 0
    %551 = vperm.xlu0 %550, %v55
    %v552 = vpop.permute.xlu0 %551
    %555 = vset.pattern.permute.xlu0 0
    %556 = vperm.xlu0 %555, %v56
    %v557 = vpop.permute.xlu0 %556
    %560 = vset.pattern.permute.xlu0 0
    %561 = vperm.xlu0 %560, %v57
    %v562 = vpop.permute.xlu0 %561
    %565 = vset.pattern.permute.xlu0 0
    %566 = vperm.xlu0 %565, %v58
    %v567 = vpop.permute.xlu0 %566
    %v569 = vmul.f32 %v545, %v552
    %v570 = vmul.f32 %v546, %v557
    %v571 = vmul.f32 %v547, %v562
    %v572 = vmul.f32 %v548, %v567
    %vm573 = vcmask 130048
    %v574 = vsel %vm573, %v569, 0.0
    %v575 = vsel %vm573, %v570, 0.0
    %v576 = vadd.f32 %v574, %v575
    %v577 = vsel %vm573, %v571, 0.0
    %v578 = vadd.f32 %v576, %v577
    %v579 = vsel %vm573, %v572, 0.0
    %v580 = vadd.f32 %v578, %v579
    %v581 = vrot.slane %v580, 4
    %v582 = vadd.f32 %v580, %v581
    %v583 = vrot.slane %v582, 2
    %v584 = vadd.f32 %v582, %v583
    %v585 = vrot.slane %v584, 1
    %v586 = vadd.f32 %v584, %v585
    %588 = vset.pattern.permute.xlu0 0
    %589 = vperm.xlu0 %588, %v59
    %v590 = vpop.permute.xlu0 %589
    %v592 = vlaneseq
    %v593 = vshrl.u32 %v592, 7
    %v594 = vsub.s32 0, %v593
    %v595 = vrot.slane %v590, %v594
    %v596 = vadd.f32 %v586, %v595
    %vm597 = vcmask 122880
    %598 = vst.msk [vmem:[#allocation3] sm:$0x1] %vm597, %v596
    // Predicated region
    $region22: #{tpu_custom_call.1} parent=1 // pred_check
      _
    $region23: #{tpu_custom_call.1} parent=1 // pred_check_branch
      %600 = sbr.rel (0) target = $region25
    $region24: #{tpu_custom_call.1} parent=1 // pred_region
      %s602 = ssub.s32 16, 16
      %603 = vsyncadd [#allocation4], %s602
      %s605 = sshll.u32 [#allocation3], 4
      %s606 = int_to_ptr.vmem [resolvable:$true] %s605
      %608 = dma.vmem_to_hbm [thread:$0]  %s606, 16, %s5, [#allocation4]
    $region25: #{tpu_custom_call.1} parent=1 // pred_fallthru
      _
    // Predicated region
    $region26: #{tpu_custom_call.1} parent=1 // pred_check
      _
    $region27: #{tpu_custom_call.1} parent=1 // pred_check_branch
      %610 = sbr.rel (0) target = $region29
    $region28: #{tpu_custom_call.1} parent=1 // pred_region
      %611 = dma.done [#allocation4], 16
    $region29: #{tpu_custom_call.1} parent=1 // pred_fallthru
      _
    %612 = vsyncpa [#allocation4], 1

// kernel: tpu_custom_call.1
$region0: #{tpu_custom_call.1}
  #allocation0 [shape = 'u32[]', space=smem, size = 0x4, offset = 0x4, fixed_abs, tag = 'smem constant byte address 0x4 - core index']
  #allocation1 [shape = 'u32[144,128]{1,0:T(1,128)}', space=vmem, size = 0x12000, scoped, tag = 'internal scratch']
  #allocation2 [shape = 'f32[1,1]{1,0:T(1,128)S(1)}', space=vmem, size = 0x200, scoped, tag = 'scoped memory for tpu_custom_call.1']
  %s0 = inlined_call_operand.vmem [shape: f32[32,16], index: 0, kind: input, shape index: {}]
  %s1 = inlined_call_operand.vmem [shape: f32[128,32], index: 1, kind: input, shape index: {}]
  %s2 = inlined_call_operand.vmem [shape: f32[128,1], index: 2, kind: input, shape index: {}]
  %s3 = inlined_call_operand.vmem [shape: f32[32,1], index: 3, kind: input, shape index: {}]
  %s4 = inlined_call_operand.<no memory space> [shape: f32[1,1], index: 4, kind: input, shape index: {}]
  %s5 = inlined_call_operand.hbm [shape: f32[1,16], index: 5, kind: output, shape index: {}]
  %s6 = sld [smem:[#allocation0]]
  $region30: #{tpu_custom_call.1} parent=0
    _
  %s8 = ssub.s32 1, %s6
  %s9 = scalar_select 0, %s8, %s6
  %v10 = vstv %s4
  %11 = vst [vmem:[#allocation2] sm:$0x1] %v10
  $region1: #{tpu_custom_call.1} parent=0
    #allocation3 [shape = 'u8[512]{0}', space=vmem, size = 0x400, scoped, tag = 'output window, operand 0, single buffered']
    #allocation4 [shape = 's32[1]{0}', space=sflag, size = 0x4, scoped, tag = 'scoped memory for tpu_custom_call.1']
    %12 = vsyncpa [#allocation4], 0
    // Predicated region
    $region2: #{tpu_custom_call.1} parent=1 // pred_check
      _
    $region3: #{tpu_custom_call.1} parent=1 // pred_check_branch
      %14 = sbr.rel (0) target = $region5
    $region4: #{tpu_custom_call.1} parent=1 // pred_region
      _
    $region5: #{tpu_custom_call.1} parent=1 // pred_fallthru
      _
    // Predicated region
    $region6: #{tpu_custom_call.1} parent=1 // pred_check
      _
    $region7: #{tpu_custom_call.1} parent=1 // pred_check_branch
      %16 = sbr.rel (0) target = $region9
    $region8: #{tpu_custom_call.1} parent=1 // pred_region
      _
    $region9: #{tpu_custom_call.1} parent=1 // pred_fallthru
      _
    // Predicated region
    $region10: #{tpu_custom_call.1} parent=1 // pred_check
      _
    $region11: #{tpu_custom_call.1} parent=1 // pred_check_branch
      %18 = sbr.rel (0) target = $region13
    $region12: #{tpu_custom_call.1} parent=1 // pred_region
      _
    $region13: #{tpu_custom_call.1} parent=1 // pred_fallthru
      _
    // Predicated region
    $region14: #{tpu_custom_call.1} parent=1 // pred_check
      _
    $region15: #{tpu_custom_call.1} parent=1 // pred_check_branch
      %20 = sbr.rel (0) target = $region17
    $region16: #{tpu_custom_call.1} parent=1 // pred_region
      _
    $region17: #{tpu_custom_call.1} parent=1 // pred_fallthru
      _
    // Predicated region
    $region18: #{tpu_custom_call.1} parent=1 // pred_check
      _
    $region19: #{tpu_custom_call.1} parent=1 // pred_check_branch
      %22 = sbr.rel (0) target = $region21
    $region20: #{tpu_custom_call.1} parent=1 // pred_region
      _
    $region21: #{tpu_custom_call.1} parent=1 // pred_fallthru
      _
    %v23 = vld [vmem:[%s1] sm:$0xff]
    %v24 = vld [vmem:[%s1 + $0x8] sm:$0xff]
    %v25 = vld [vmem:[%s1 + $0x10] sm:$0xff]
    %v26 = vld [vmem:[%s1 + $0x18] sm:$0xff]
    %v27 = vld [vmem:[%s1 + $0x20] sm:$0xff]
    %v28 = vld [vmem:[%s1 + $0x28] sm:$0xff]
    %v29 = vld [vmem:[%s1 + $0x30] sm:$0xff]
    %v30 = vld [vmem:[%s1 + $0x38] sm:$0xff]
    %v31 = vld [vmem:[%s1 + $0x40] sm:$0xff]
    %v32 = vld [vmem:[%s1 + $0x48] sm:$0xff]
    %v33 = vld [vmem:[%s1 + $0x50] sm:$0xff]
    %v34 = vld [vmem:[%s1 + $0x58] sm:$0xff]
    %v35 = vld [vmem:[%s1 + $0x60] sm:$0xff]
    %v36 = vld [vmem:[%s1 + $0x68] sm:$0xff]
    %v37 = vld [vmem:[%s1 + $0x70] sm:$0xff]
    %v38 = vld [vmem:[%s1 + $0x78] sm:$0xff]
    %v39 = vld [vmem:[%s2] sm:$0xff]
    %v40 = vld [vmem:[%s2 + $0x8] sm:$0xff]
    %v41 = vld [vmem:[%s2 + $0x10] sm:$0xff]
    %v42 = vld [vmem:[%s2 + $0x18] sm:$0xff]
    %v43 = vld [vmem:[%s2 + $0x20] sm:$0xff]
    %v44 = vld [vmem:[%s2 + $0x28] sm:$0xff]
    %v45 = vld [vmem:[%s2 + $0x30] sm:$0xff]
    %v46 = vld [vmem:[%s2 + $0x38] sm:$0xff]
    %v47 = vld [vmem:[%s2 + $0x40] sm:$0xff]
    %v48 = vld [vmem:[%s2 + $0x48] sm:$0xff]
    %v49 = vld [vmem:[%s2 + $0x50] sm:$0xff]
    %v50 = vld [vmem:[%s2 + $0x58] sm:$0xff]
    %v51 = vld [vmem:[%s2 + $0x60] sm:$0xff]
    %v52 = vld [vmem:[%s2 + $0x68] sm:$0xff]
    %v53 = vld [vmem:[%s2 + $0x70] sm:$0xff]
    %v54 = vld [vmem:[%s2 + $0x78] sm:$0xff]
    %v55 = vld [vmem:[%s3] sm:$0xff]
    %v56 = vld [vmem:[%s3 + $0x8] sm:$0xff]
    %v57 = vld [vmem:[%s3 + $0x10] sm:$0xff]
    %v58 = vld [vmem:[%s3 + $0x18] sm:$0xff]
    %v59 = vld [vmem:[#allocation2] sm:$0x1]
    %v60 = vld [vmem:[%s0] sm:$0xff]
    %v61 = vld [vmem:[%s0 + $0x8] sm:$0xff]
    %v62 = vld [vmem:[%s0 + $0x10] sm:$0xff]
    %v63 = vld [vmem:[%s0 + $0x18] sm:$0xff]
    %65 = vset.pattern.permute.xlu0 0
    %66 = vperm.xlu0 %65, %v39
    %v67 = vpop.permute.xlu0 %66
    %70 = vset.pattern.permute.xlu0 0
    %71 = vperm.xlu0 %70, %v40
    %v72 = vpop.permute.xlu0 %71
    %75 = vset.pattern.permute.xlu0 0
    %76 = vperm.xlu0 %75, %v41
    %v77 = vpop.permute.xlu0 %76
    %80 = vset.pattern.permute.xlu0 0
    %81 = vperm.xlu0 %80, %v42
    %v82 = vpop.permute.xlu0 %81
    %vm84 = vcmask 261120
    %v86 = vsel %vm84, %v23, 0
    %v89 = vsel %vm84, %v24, 0
    %v92 = vsel %vm84, %v25, 0
    %v95 = vsel %vm84, %v26, 0
    %97 = vmatprep.subr.mxu0 0.0
    %98 = vmatpush1.msra.mxu0 0.0
    %99 = vmatprep.subr.mxu0 0.0
    %100 = vmatpush1.msra.mxu0 0.0
    %101 = vmatprep.subr.mxu0 0.0
    %102 = vmatpush1.msra.mxu0 0.0
    %103 = vmatprep.subr.mxu0 0.0
    %104 = vmatpush1.msra.mxu0 0.0
    %105 = vmatprep.subr.mxu0 0.0
    %106 = vmatpush1.msra.mxu0 0.0
    %107 = vmatprep.subr.mxu0 0.0
    %108 = vmatpush1.msra.mxu0 0.0
    %109 = vmatprep.subr.mxu0 0.0
    %110 = vmatpush1.msra.mxu0 0.0
    %111 = vmatprep.subr.mxu0 0.0
    %112 = vmatpush1.msra.mxu0 0.0
    %113 = vmatprep.subr.mxu0 0.0
    %114 = vmatpush1.msra.mxu0 0.0
    %115 = vmatprep.subr.mxu0 0.0
    %116 = vmatpush1.msra.mxu0 0.0
    %117 = vmatprep.subr.mxu0 0.0
    %118 = vmatpush1.msra.mxu0 0.0
    %119 = vmatprep.subr.mxu0 0.0
    %120 = vmatpush1.msra.mxu0 0.0
    %121 = vmatprep.subr.mxu0 0.0
    %122 = vmatpush1.msra.mxu0 %v63
    %123 = vmatprep.subr.mxu0 0.0
    %124 = vmatpush1.msra.mxu0 %v62
    %125 = vmatprep.subr.mxu0 0.0
    %126 = vmatpush1.msra.mxu0 %v61
    %127 = vmatprep.subr.mxu0 0.0
    %128 = vmatpush1.msra.mxu0 %v60
    %129 = vmatprep.subr.mxu0 0.0
    %130 = vmatpush2.msra.mxu0 0.0
    %131 = vmatprep.subr.mxu0 0.0
    %132 = vmatpush2.msra.mxu0 0.0
    %133 = vmatprep.subr.mxu0 0.0
    %134 = vmatpush2.msra.mxu0 0.0
    %135 = vmatprep.subr.mxu0 0.0
    %136 = vmatpush2.msra.mxu0 0.0
    %137 = vmatprep.subr.mxu0 0.0
    %138 = vmatpush2.msra.mxu0 0.0
    %139 = vmatprep.subr.mxu0 0.0
    %140 = vmatpush2.msra.mxu0 0.0
    %141 = vmatprep.subr.mxu0 0.0
    %142 = vmatpush2.msra.mxu0 0.0
    %143 = vmatprep.subr.mxu0 0.0
    %144 = vmatpush2.msra.mxu0 0.0
    %145 = vmatprep.subr.mxu0 0.0
    %146 = vmatpush2.msra.mxu0 0.0
    %147 = vmatprep.subr.mxu0 0.0
    %148 = vmatpush2.msra.mxu0 0.0
    %149 = vmatprep.subr.mxu0 0.0
    %150 = vmatpush2.msra.mxu0 0.0
    %151 = vmatprep.subr.mxu0 0.0
    %152 = vmatpush2.msra.mxu0 0.0
    %153 = vmatprep.subr.mxu0 0.0
    %154 = vmatpush2.msra.mxu0 0.0
    %155 = vmatprep.subr.mxu0 0.0
    %156 = vmatpush2.msra.mxu0 0.0
    %157 = vmatprep.subr.mxu0 0.0
    %158 = vmatpush2.msra.mxu0 0.0
    %159 = vmatprep.subr.mxu0 0.0
    %160 = vmatpush2.msra.mxu0 0.0
    %161 = vmatprep.mubr.f32.mxu0 0.0
    %162 = vmatmul.mubr.f32.gmra.mxu0 %v86
    %v163 = vpop.f32.mrf.mxu0
    %v164 = vadd.f32 %v67, %v163
    %v165 = vpop.f32.mrf.mxu0
    %166 = vmatprep.mubr.f32.mxu0 0.0
    %167 = vmatmul.mubr.f32.gmra.mxu0 %v89
    %v168 = vpop.f32.mrf.mxu0
    %v169 = vadd.f32 %v72, %v168
    %v170 = vpop.f32.mrf.mxu0
    %171 = vmatprep.mubr.f32.mxu0 0.0
    %172 = vmatmul.mubr.f32.gmra.mxu0 %v92
    %v173 = vpop.f32.mrf.mxu0
    %v174 = vadd.f32 %v77, %v173
    %v175 = vpop.f32.mrf.mxu0
    %176 = vmatprep.mubr.f32.mxu0 0.0
    %177 = vmatmul.mubr.f32.gmra.mxu0 %v95
    %v178 = vpop.f32.mrf.mxu0
    %v179 = vadd.f32 %v82, %v178
    %v180 = vpop.f32.mrf.mxu0
    %181 = vdwg.mxu0
    %v182 = vmax.f32 %v164, 0.0
    %v183 = vmax.f32 %v169, 0.0
    %v184 = vmax.f32 %v174, 0.0
    %v185 = vmax.f32 %v179, 0.0
    %187 = vset.pattern.permute.xlu0 0
    %188 = vperm.xlu0 %187, %v43
    %v189 = vpop.permute.xlu0 %188
    %192 = vset.pattern.permute.xlu0 0
    %193 = vperm.xlu0 %192, %v44
    %v194 = vpop.permute.xlu0 %193
    %197 = vset.pattern.permute.xlu0 0
    %198 = vperm.xlu0 %197, %v45
    %v199 = vpop.permute.xlu0 %198
    %202 = vset.pattern.permute.xlu0 0
    %203 = vperm.xlu0 %202, %v46
    %v204 = vpop.permute.xlu0 %203
    %v207 = vsel %vm84, %v27, 0
    %v210 = vsel %vm84, %v28, 0
    %v213 = vsel %vm84, %v29, 0
    %v216 = vsel %vm84, %v30, 0
    %218 = vmatprep.subr.mxu0 0.0
    %219 = vmatpush1.msra.mxu0 0.0
    %220 = vmatprep.subr.mxu0 0.0
    %221 = vmatpush1.msra.mxu0 0.0
    %222 = vmatprep.subr.mxu0 0.0
    %223 = vmatpush1.msra.mxu0 0.0
    %224 = vmatprep.subr.mxu0 0.0
    %225 = vmatpush1.msra.mxu0 0.0
    %226 = vmatprep.subr.mxu0 0.0
    %227 = vmatpush1.msra.mxu0 0.0
    %228 = vmatprep.subr.mxu0 0.0
    %229 = vmatpush1.msra.mxu0 0.0
    %230 = vmatprep.subr.mxu0 0.0
    %231 = vmatpush1.msra.mxu0 0.0
    %232 = vmatprep.subr.mxu0 0.0
    %233 = vmatpush1.msra.mxu0 0.0
    %234 = vmatprep.subr.mxu0 0.0
    %235 = vmatpush1.msra.mxu0 0.0
    %236 = vmatprep.subr.mxu0 0.0
    %237 = vmatpush1.msra.mxu0 0.0
    %238 = vmatprep.subr.mxu0 0.0
    %239 = vmatpush1.msra.mxu0 0.0
    %240 = vmatprep.subr.mxu0 0.0
    %241 = vmatpush1.msra.mxu0 0.0
    %242 = vmatprep.subr.mxu0 0.0
    %243 = vmatpush1.msra.mxu0 %v185
    %244 = vmatprep.subr.mxu0 0.0
    %245 = vmatpush1.msra.mxu0 %v184
    %246 = vmatprep.subr.mxu0 0.0
    %247 = vmatpush1.msra.mxu0 %v183
    %248 = vmatprep.subr.mxu0 0.0
    %249 = vmatpush1.msra.mxu0 %v182
    %250 = vmatprep.subr.mxu0 0.0
    %251 = vmatpush2.msra.mxu0 0.0
    %252 = vmatprep.subr.mxu0 0.0
    %253 = vmatpush2.msra.mxu0 0.0
    %254 = vmatprep.subr.mxu0 0.0
    %255 = vmatpush2.msra.mxu0 0.0
    %256 = vmatprep.subr.mxu0 0.0
    %257 = vmatpush2.msra.mxu0 0.0
    %258 = vmatprep.subr.mxu0 0.0
    %259 = vmatpush2.msra.mxu0 0.0
    %260 = vmatprep.subr.mxu0 0.0
    %261 = vmatpush2.msra.mxu0 0.0
    %262 = vmatprep.subr.mxu0 0.0
    %263 = vmatpush2.msra.mxu0 0.0
    %264 = vmatprep.subr.mxu0 0.0
    %265 = vmatpush2.msra.mxu0 0.0
    %266 = vmatprep.subr.mxu0 0.0
    %267 = vmatpush2.msra.mxu0 0.0
    %268 = vmatprep.subr.mxu0 0.0
    %269 = vmatpush2.msra.mxu0 0.0
    %270 = vmatprep.subr.mxu0 0.0
    %271 = vmatpush2.msra.mxu0 0.0
    %272 = vmatprep.subr.mxu0 0.0
    %273 = vmatpush2.msra.mxu0 0.0
    %274 = vmatprep.subr.mxu0 0.0
    %275 = vmatpush2.msra.mxu0 0.0
    %276 = vmatprep.subr.mxu0 0.0
    %277 = vmatpush2.msra.mxu0 0.0
    %278 = vmatprep.subr.mxu0 0.0
    %279 = vmatpush2.msra.mxu0 0.0
    %280 = vmatprep.subr.mxu0 0.0
    %281 = vmatpush2.msra.mxu0 0.0
    %282 = vmatprep.mubr.f32.mxu0 0.0
    %283 = vmatmul.mubr.f32.gmra.mxu0 %v207
    %v284 = vpop.f32.mrf.mxu0
    %v285 = vadd.f32 %v189, %v284
    %v286 = vpop.f32.mrf.mxu0
    %287 = vmatprep.mubr.f32.mxu0 0.0
    %288 = vmatmul.mubr.f32.gmra.mxu0 %v210
    %v289 = vpop.f32.mrf.mxu0
    %v290 = vadd.f32 %v194, %v289
    %v291 = vpop.f32.mrf.mxu0
    %292 = vmatprep.mubr.f32.mxu0 0.0
    %293 = vmatmul.mubr.f32.gmra.mxu0 %v213
    %v294 = vpop.f32.mrf.mxu0
    %v295 = vadd.f32 %v199, %v294
    %v296 = vpop.f32.mrf.mxu0
    %297 = vmatprep.mubr.f32.mxu0 0.0
    %298 = vmatmul.mubr.f32.gmra.mxu0 %v216
    %v299 = vpop.f32.mrf.mxu0
    %v300 = vadd.f32 %v204, %v299
    %v301 = vpop.f32.mrf.mxu0
    %302 = vdwg.mxu0
    %v303 = vmax.f32 %v285, 0.0
    %v304 = vmax.f32 %v290, 0.0
    %v305 = vmax.f32 %v295, 0.0
    %v306 = vmax.f32 %v300, 0.0
    %308 = vset.pattern.permute.xlu0 0
    %309 = vperm.xlu0 %308, %v47
    %v310 = vpop.permute.xlu0 %309
    %313 = vset.pattern.permute.xlu0 0
    %314 = vperm.xlu0 %313, %v48
    %v315 = vpop.permute.xlu0 %314
    %318 = vset.pattern.permute.xlu0 0
    %319 = vperm.xlu0 %318, %v49
    %v320 = vpop.permute.xlu0 %319
    %323 = vset.pattern.permute.xlu0 0
    %324 = vperm.xlu0 %323, %v50
    %v325 = vpop.permute.xlu0 %324
    %v328 = vsel %vm84, %v31, 0
    %v331 = vsel %vm84, %v32, 0
    %v334 = vsel %vm84, %v33, 0
    %v337 = vsel %vm84, %v34, 0
    %339 = vmatprep.subr.mxu0 0.0
    %340 = vmatpush1.msra.mxu0 0.0
    %341 = vmatprep.subr.mxu0 0.0
    %342 = vmatpush1.msra.mxu0 0.0
    %343 = vmatprep.subr.mxu0 0.0
    %344 = vmatpush1.msra.mxu0 0.0
    %345 = vmatprep.subr.mxu0 0.0
    %346 = vmatpush1.msra.mxu0 0.0
    %347 = vmatprep.subr.mxu0 0.0
    %348 = vmatpush1.msra.mxu0 0.0
    %349 = vmatprep.subr.mxu0 0.0
    %350 = vmatpush1.msra.mxu0 0.0
    %351 = vmatprep.subr.mxu0 0.0
    %352 = vmatpush1.msra.mxu0 0.0
    %353 = vmatprep.subr.mxu0 0.0
    %354 = vmatpush1.msra.mxu0 0.0
    %355 = vmatprep.subr.mxu0 0.0
    %356 = vmatpush1.msra.mxu0 0.0
    %357 = vmatprep.subr.mxu0 0.0
    %358 = vmatpush1.msra.mxu0 0.0
    %359 = vmatprep.subr.mxu0 0.0
    %360 = vmatpush1.msra.mxu0 0.0
    %361 = vmatprep.subr.mxu0 0.0
    %362 = vmatpush1.msra.mxu0 0.0
    %363 = vmatprep.subr.mxu0 0.0
    %364 = vmatpush1.msra.mxu0 %v306
    %365 = vmatprep.subr.mxu0 0.0
    %366 = vmatpush1.msra.mxu0 %v305
    %367 = vmatprep.subr.mxu0 0.0
    %368 = vmatpush1.msra.mxu0 %v304
    %369 = vmatprep.subr.mxu0 0.0
    %370 = vmatpush1.msra.mxu0 %v303
    %371 = vmatprep.subr.mxu0 0.0
    %372 = vmatpush2.msra.mxu0 0.0
    %373 = vmatprep.subr.mxu0 0.0
    %374 = vmatpush2.msra.mxu0 0.0
    %375 = vmatprep.subr.mxu0 0.0
    %376 = vmatpush2.msra.mxu0 0.0
    %377 = vmatprep.subr.mxu0 0.0
    %378 = vmatpush2.msra.mxu0 0.0
    %379 = vmatprep.subr.mxu0 0.0
    %380 = vmatpush2.msra.mxu0 0.0
    %381 = vmatprep.subr.mxu0 0.0
    %382 = vmatpush2.msra.mxu0 0.0
    %383 = vmatprep.subr.mxu0 0.0
    %384 = vmatpush2.msra.mxu0 0.0
    %385 = vmatprep.subr.mxu0 0.0
    %386 = vmatpush2.msra.mxu0 0.0
    %387 = vmatprep.subr.mxu0 0.0
    %388 = vmatpush2.msra.mxu0 0.0
    %389 = vmatprep.subr.mxu0 0.0
    %390 = vmatpush2.msra.mxu0 0.0
    %391 = vmatprep.subr.mxu0 0.0
    %392 = vmatpush2.msra.mxu0 0.0
    %393 = vmatprep.subr.mxu0 0.0
    %394 = vmatpush2.msra.mxu0 0.0
    %395 = vmatprep.subr.mxu0 0.0
    %396 = vmatpush2.msra.mxu0 0.0
    %397 = vmatprep.subr.mxu0 0.0
    %398 = vmatpush2.msra.mxu0 0.0
    %399 = vmatprep.subr.mxu0 0.0
    %400 = vmatpush2.msra.mxu0 0.0
    %401 = vmatprep.subr.mxu0 0.0
    %402 = vmatpush2.msra.mxu0 0.0
    %403 = vmatprep.mubr.f32.mxu0 0.0
    %404 = vmatmul.mubr.f32.gmra.mxu0 %v328
    %v405 = vpop.f32.mrf.mxu0
    %v406 = vadd.f32 %v310, %v405
    %v407 = vpop.f32.mrf.mxu0
    %408 = vmatprep.mubr.f32.mxu0 0.0
    %409 = vmatmul.mubr.f32.gmra.mxu0 %v331
    %v410 = vpop.f32.mrf.mxu0
    %v411 = vadd.f32 %v315, %v410
    %v412 = vpop.f32.mrf.mxu0
    %413 = vmatprep.mubr.f32.mxu0 0.0
    %414 = vmatmul.mubr.f32.gmra.mxu0 %v334
    %v415 = vpop.f32.mrf.mxu0
    %v416 = vadd.f32 %v320, %v415
    %v417 = vpop.f32.mrf.mxu0
    %418 = vmatprep.mubr.f32.mxu0 0.0
    %419 = vmatmul.mubr.f32.gmra.mxu0 %v337
    %v420 = vpop.f32.mrf.mxu0
    %v421 = vadd.f32 %v325, %v420
    %v422 = vpop.f32.mrf.mxu0
    %423 = vdwg.mxu0
    %v424 = vmax.f32 %v406, 0.0
    %v425 = vmax.f32 %v411, 0.0
    %v426 = vmax.f32 %v416, 0.0
    %v427 = vmax.f32 %v421, 0.0
    %429 = vset.pattern.permute.xlu0 0
    %430 = vperm.xlu0 %429, %v51
    %v431 = vpop.permute.xlu0 %430
    %434 = vset.pattern.permute.xlu0 0
    %435 = vperm.xlu0 %434, %v52
    %v436 = vpop.permute.xlu0 %435
    %439 = vset.pattern.permute.xlu0 0
    %440 = vperm.xlu0 %439, %v53
    %v441 = vpop.permute.xlu0 %440
    %444 = vset.pattern.permute.xlu0 0
    %445 = vperm.xlu0 %444, %v54
    %v446 = vpop.permute.xlu0 %445
    %v449 = vsel %vm84, %v35, 0
    %v452 = vsel %vm84, %v36, 0
    %v455 = vsel %vm84, %v37, 0
    %v458 = vsel %vm84, %v38, 0
    %460 = vmatprep.subr.mxu0 0.0
    %461 = vmatpush1.msra.mxu0 0.0
    %462 = vmatprep.subr.mxu0 0.0
    %463 = vmatpush1.msra.mxu0 0.0
    %464 = vmatprep.subr.mxu0 0.0
    %465 = vmatpush1.msra.mxu0 0.0
    %466 = vmatprep.subr.mxu0 0.0
    %467 = vmatpush1.msra.mxu0 0.0
    %468 = vmatprep.subr.mxu0 0.0
    %469 = vmatpush1.msra.mxu0 0.0
    %470 = vmatprep.subr.mxu0 0.0
    %471 = vmatpush1.msra.mxu0 0.0
    %472 = vmatprep.subr.mxu0 0.0
    %473 = vmatpush1.msra.mxu0 0.0
    %474 = vmatprep.subr.mxu0 0.0
    %475 = vmatpush1.msra.mxu0 0.0
    %476 = vmatprep.subr.mxu0 0.0
    %477 = vmatpush1.msra.mxu0 0.0
    %478 = vmatprep.subr.mxu0 0.0
    %479 = vmatpush1.msra.mxu0 0.0
    %480 = vmatprep.subr.mxu0 0.0
    %481 = vmatpush1.msra.mxu0 0.0
    %482 = vmatprep.subr.mxu0 0.0
    %483 = vmatpush1.msra.mxu0 0.0
    %484 = vmatprep.subr.mxu0 0.0
    %485 = vmatpush1.msra.mxu0 %v427
    %486 = vmatprep.subr.mxu0 0.0
    %487 = vmatpush1.msra.mxu0 %v426
    %488 = vmatprep.subr.mxu0 0.0
    %489 = vmatpush1.msra.mxu0 %v425
    %490 = vmatprep.subr.mxu0 0.0
    %491 = vmatpush1.msra.mxu0 %v424
    %492 = vmatprep.subr.mxu0 0.0
    %493 = vmatpush2.msra.mxu0 0.0
    %494 = vmatprep.subr.mxu0 0.0
    %495 = vmatpush2.msra.mxu0 0.0
    %496 = vmatprep.subr.mxu0 0.0
    %497 = vmatpush2.msra.mxu0 0.0
    %498 = vmatprep.subr.mxu0 0.0
    %499 = vmatpush2.msra.mxu0 0.0
    %500 = vmatprep.subr.mxu0 0.0
    %501 = vmatpush2.msra.mxu0 0.0
    %502 = vmatprep.subr.mxu0 0.0
    %503 = vmatpush2.msra.mxu0 0.0
    %504 = vmatprep.subr.mxu0 0.0
    %505 = vmatpush2.msra.mxu0 0.0
    %506 = vmatprep.subr.mxu0 0.0
    %507 = vmatpush2.msra.mxu0 0.0
    %508 = vmatprep.subr.mxu0 0.0
    %509 = vmatpush2.msra.mxu0 0.0
    %510 = vmatprep.subr.mxu0 0.0
    %511 = vmatpush2.msra.mxu0 0.0
    %512 = vmatprep.subr.mxu0 0.0
    %513 = vmatpush2.msra.mxu0 0.0
    %514 = vmatprep.subr.mxu0 0.0
    %515 = vmatpush2.msra.mxu0 0.0
    %516 = vmatprep.subr.mxu0 0.0
    %517 = vmatpush2.msra.mxu0 0.0
    %518 = vmatprep.subr.mxu0 0.0
    %519 = vmatpush2.msra.mxu0 0.0
    %520 = vmatprep.subr.mxu0 0.0
    %521 = vmatpush2.msra.mxu0 0.0
    %522 = vmatprep.subr.mxu0 0.0
    %523 = vmatpush2.msra.mxu0 0.0
    %524 = vmatprep.mubr.f32.mxu0 0.0
    %525 = vmatmul.mubr.f32.gmra.mxu0 %v449
    %v526 = vpop.f32.mrf.mxu0
    %v527 = vadd.f32 %v431, %v526
    %v528 = vpop.f32.mrf.mxu0
    %529 = vmatprep.mubr.f32.mxu0 0.0
    %530 = vmatmul.mubr.f32.gmra.mxu0 %v452
    %v531 = vpop.f32.mrf.mxu0
    %v532 = vadd.f32 %v436, %v531
    %v533 = vpop.f32.mrf.mxu0
    %534 = vmatprep.mubr.f32.mxu0 0.0
    %535 = vmatmul.mubr.f32.gmra.mxu0 %v455
    %v536 = vpop.f32.mrf.mxu0
    %v537 = vadd.f32 %v441, %v536
    %v538 = vpop.f32.mrf.mxu0
    %539 = vmatprep.mubr.f32.mxu0 0.0
    %540 = vmatmul.mubr.f32.gmra.mxu0 %v458
    %v541 = vpop.f32.mrf.mxu0
    %v542 = vadd.f32 %v446, %v541
    %v543 = vpop.f32.mrf.mxu0
    %544 = vdwg.mxu0
    %v545 = vmax.f32 %v527, 0.0
    %v546 = vmax.f32 %v532, 0.0
    %v547 = vmax.f32 %v537, 0.0
    %v548 = vmax.f32 %v542, 0.0
    %550 = vset.pattern.permute.xlu0 0
    %551 = vperm.xlu0 %550, %v55
    %v552 = vpop.permute.xlu0 %551
    %555 = vset.pattern.permute.xlu0 0
    %556 = vperm.xlu0 %555, %v56
    %v557 = vpop.permute.xlu0 %556
    %560 = vset.pattern.permute.xlu0 0
    %561 = vperm.xlu0 %560, %v57
    %v562 = vpop.permute.xlu0 %561
    %565 = vset.pattern.permute.xlu0 0
    %566 = vperm.xlu0 %565, %v58
    %v567 = vpop.permute.xlu0 %566
    %v569 = vmul.f32 %v545, %v552
    %v570 = vmul.f32 %v546, %v557
    %v571 = vmul.f32 %v547, %v562
    %v572 = vmul.f32 %v548, %v567
    %vm573 = vcmask 130048
    %v574 = vsel %vm573, %v569, 0.0
    %v575 = vsel %vm573, %v570, 0.0
    %v576 = vadd.f32 %v574, %v575
    %v577 = vsel %vm573, %v571, 0.0
    %v578 = vadd.f32 %v576, %v577
    %v579 = vsel %vm573, %v572, 0.0
    %v580 = vadd.f32 %v578, %v579
    %v581 = vrot.slane %v580, 4
    %v582 = vadd.f32 %v580, %v581
    %v583 = vrot.slane %v582, 2
    %v584 = vadd.f32 %v582, %v583
    %v585 = vrot.slane %v584, 1
    %v586 = vadd.f32 %v584, %v585
    %588 = vset.pattern.permute.xlu0 0
    %589 = vperm.xlu0 %588, %v59
    %v590 = vpop.permute.xlu0 %589
    %v592 = vlaneseq
    %v593 = vshrl.u32 %v592, 7
    %v594 = vsub.s32 0, %v593
    %v595 = vrot.slane %v590, %v594
    %v596 = vadd.f32 %v586, %v595
    %vm597 = vcmask 122880
    %598 = vst.msk [vmem:[#allocation3] sm:$0x1] %vm597, %v596
    // Predicated region
    $region22: #{tpu_custom_call.1} parent=1 // pred_check
      _
    $region23: #{tpu_custom_call.1} parent=1 // pred_check_branch
      %600 = sbr.rel (0) target = $region25
    $region24: #{tpu_custom_call.1} parent=1 // pred_region
      %s602 = ssub.s32 16, 16
      %603 = vsyncadd [#allocation4], %s602
      %s605 = sshll.u32 [#allocation3], 4
      %s606 = int_to_ptr.vmem [resolvable:$true] %s605
      %608 = dma.vmem_to_hbm [thread:$0]  %s606, 16, %s5, [#allocation4]
    $region25: #{tpu_custom_call.1} parent=1 // pred_fallthru
      _
    // Predicated region
    $region26: #{tpu_custom_call.1} parent=1 // pred_check
      _
    $region27: #{tpu_custom_call.1} parent=1 // pred_check_branch
      %610 = sbr.rel (0) target = $region29
    $region28: #{tpu_custom_call.1} parent=1 // pred_region
      %611 = dma.done [#allocation4], 16
    $region29: #{tpu_custom_call.1} parent=1 // pred_fallthru
      _
    %612 = vsyncpa [#allocation4], 1

</llo_original>
